<compile_context>
chip_gen: v7x
topology: tpu7x:2x2x1
jax: 0.10.0
libtpu: 0.0.40
codegen_flags: <defaults>
</compile_context>

<pallas_src>
import functools
import math

import jax
import jax.numpy as jnp
from jax.experimental import pallas as pl
from jax.experimental.pallas import tpu as pltpu


# --------------------------- hardware-aware knobs ------------------------------

def _vmem_capacity_bytes():
    try:
        return int(pltpu.get_tpu_info().vmem_capacity_bytes)
    except Exception:
        return 64 * 1024 * 1024          # conservative (v7x per-core VMEM)


_VMEM_CAP = _vmem_capacity_bytes()
_BIG_VMEM = _VMEM_CAP >= 100 * 1024 * 1024     # v5e/v6e (128 MiB) vs v7x (64 MiB)
_ROW_TARGET = 512 if _BIG_VMEM else 256        # v5e/v6e: push row tiles to 512
_VMEM_LIMIT = int(max(32 * 2**20, min(_VMEM_CAP - 8 * 2**20, 100 * 2**20)))


# ------------------------------ tiling helpers --------------------------------

def _row_tile(n, target=512):
    """Largest row tile <= target dividing n (mult of 8); prefer an even block
    count so the two v7x TensorCores split a 'parallel' axis evenly."""
    cands = (1024, 512, 256, 128, 64, 32, 16, 8)
    for c in cands:
        if c <= target and n % c == 0 and (n // c) % 2 == 0:
            return c
    for c in cands:
        if c <= target and n % c == 0:
            return c
    return n


def _lane_tile(n, target=512):
    """Largest lane tile <= target that divides n and is a 128-multiple, else full."""
    for c in (1024, 512, 384, 256, 128):
        if c <= target and n % c == 0:
            return c
    return n


def _head_group(H, D, max_gd=256):
    """Heads per attention / out-proj group so G*D <= 256 and G | H."""
    g = max(1, min(H, max_gd // max(D, 1)))
    while H % g:
        g -= 1
    return g


def _gelu_tanh(x):
    # DeepSpeed inference GeLU (tanh approximation), fp32 on the VPU/EUP.
    return x * 0.5 * (1.0 + jnp.tanh(0.7978845608028654 * x * (1.0 + 0.044715 * x * x)))


# ------------------------- fused pre-LN + QKV GEMM ----------------------------

def _ln_qkv_kernel(x_ref, nw_ref, nb_ref, w_ref, b_ref, o_ref, ln_sc, *, eps):
    # LN is computed once per row tile (j == 0, inner grid axis) and cached in a
    # bf16 VMEM scratch reused by every head GEMM of the same row tile.
    @pl.when(pl.program_id(1) == 0)
    def _():
        x = x_ref[...].astype(jnp.float32)
        mean = jnp.mean(x, axis=-1, keepdims=True)
        var = jnp.mean(jnp.square(x - mean), axis=-1, keepdims=True)
        y = (x - mean) * jax.lax.rsqrt(var + eps) * nw_ref[...] + nb_ref[...]
        ln_sc[...] = y.astype(jnp.bfloat16)

    acc = jnp.dot(ln_sc[...], w_ref[0], preferred_element_type=jnp.float32)
    o_ref[0] = (acc + b_ref[0]).astype(o_ref.dtype)


def pallas_ln_qkv(x2d, norm_w, norm_b, qkv_w_heads, qkv_b_heads, eps):
    """LN(x) @ Wqkv + b, written directly in head-major (3H, T, D) bf16 layout."""
    T, M = x2d.shape
    n3h, _, D = qkv_w_heads.shape
    tm = _row_tile(T, _ROW_TARGET)
    # TODO(synk): on v6e/v7x a grouped-concat weight layout (M, G*D) would feed
    # the MXU with N=256 per step; kept per-head (N=D) to avoid in-kernel
    # lane-splitting relayouts of the head-major output.
    return pl.pallas_call(
        functools.partial(_ln_qkv_kernel, eps=eps),
        out_shape=jax.ShapeDtypeStruct((n3h, T, D), jnp.bfloat16),
        grid=(T // tm, n3h),
        in_specs=[
            pl.BlockSpec((tm, M), lambda i, j: (i, 0)),
            pl.BlockSpec((1, M), lambda i, j: (0, 0)),
            pl.BlockSpec((1, M), lambda i, j: (0, 0)),
            pl.BlockSpec((1, M, D), lambda i, j: (j, 0, 0)),
            pl.BlockSpec((1, 1, D), lambda i, j: (j, 0, 0)),
        ],
        out_specs=pl.BlockSpec((1, tm, D), lambda i, j: (j, i, 0)),
        scratch_shapes=[pltpu.VMEM((tm, M), jnp.bfloat16)],
        compiler_params=pltpu.CompilerParams(
            dimension_semantics=("parallel", "arbitrary"),
            vmem_limit_bytes=_VMEM_LIMIT),
    )(x2d, norm_w.reshape(1, M), norm_b.reshape(1, M), qkv_w_heads, qkv_b_heads)


# ------------------------- flash attention (online softmax) -------------------

def _flash_attn_kernel(q_ref, k_ref, v_ref, o_ref, m_sc, l_sc, acc_sc):
    ki = pl.program_id(3)

    @pl.when(ki == 0)
    def _():
        m_sc[...] = jnp.full_like(m_sc, -jnp.inf)
        l_sc[...] = jnp.zeros_like(l_sc)
        acc_sc[...] = jnp.zeros_like(acc_sc)

    # 1/sqrt(D) is already folded into the Q projection weights/bias.
    s = jnp.einsum('gqd,gkd->gqk', q_ref[...], k_ref[...],
                   preferred_element_type=jnp.float32)
    m_prev = m_sc[...]
    m_new = jnp.maximum(m_prev, jnp.max(s, axis=-1, keepdims=True))
    alpha = jnp.exp(m_prev - m_new)
    p = jnp.exp(s - m_new)
    l_sc[...] = alpha * l_sc[...] + jnp.sum(p, axis=-1, keepdims=True)
    acc_sc[...] = alpha * acc_sc[...] + jnp.einsum(
        'gqk,gkd->gqd', p.astype(jnp.bfloat16), v_ref[...],
        preferred_element_type=jnp.float32)
    m_sc[...] = m_new

    @pl.when(ki == pl.num_programs(3) - 1)
    def _():
        o_ref[...] = (acc_sc[...] *
                      pl.reciprocal(l_sc[...], approx=True)).astype(o_ref.dtype)


def pallas_flash_attention(qkv_heads, B, S, H, D, G):
    """qkv_heads: (3H, T, D) bf16. G heads per grid step. Returns ctx (H, T, D) bf16."""
    T = B * S
    NG = H // G
    tq = _row_tile(S, 256)
    tk = _row_tile(S, 512)     # larger KV tiles amortize the ~0.35us/step overhead
    nq, nk = S // tq, S // tk
    q_spec = pl.BlockSpec((G, tq, D), lambda b, hg, qi, ki: (hg, b * nq + qi, 0))
    k_spec = pl.BlockSpec((G, tk, D), lambda b, hg, qi, ki: (NG + hg, b * nk + ki, 0))
    v_spec = pl.BlockSpec((G, tk, D), lambda b, hg, qi, ki: (2 * NG + hg, b * nk + ki, 0))
    o_spec = pl.BlockSpec((G, tq, D), lambda b, hg, qi, ki: (hg, b * nq + qi, 0))
    return pl.pallas_call(
        _flash_attn_kernel,
        out_shape=jax.ShapeDtypeStruct((H, T, D), jnp.bfloat16),
        grid=(B, NG, nq, nk),
        in_specs=[q_spec, k_spec, v_spec],
        out_specs=o_spec,
        scratch_shapes=[pltpu.VMEM((G, tq, 1), jnp.float32),
                        pltpu.VMEM((G, tq, 1), jnp.float32),
                        pltpu.VMEM((G, tq, D), jnp.float32)],
        compiler_params=pltpu.CompilerParams(
            dimension_semantics=("parallel", "parallel", "parallel", "arbitrary"),
            vmem_limit_bytes=_VMEM_LIMIT),
    )(qkv_heads, qkv_heads, qkv_heads)


# ------ fused: out-proj (head-group K-tiled) + bias + residual + LN2 + gate ----

def _outproj_ln_gate_kernel(ctx_ref, wo_ref, ob_ref, res_ref, nw_ref, nb_ref,
                            gw_ref, radd_ref, ln_ref, logit_ref, acc_ref,
                            *, eps, g_heads):
    k = pl.program_id(1)

    @pl.when(k == 0)
    def _():
        acc_ref[...] = jnp.zeros_like(acc_ref)

    # G head contributions per K step -> one acc read-modify-write per step.
    # TODO(synk): packing G*D contiguous in ctx would allow a single K=G*D dot
    # (full 256-deep MXU on v6e/v7x); kept per-head dots to avoid relayouts.
    part = jnp.dot(ctx_ref[0], wo_ref[0], preferred_element_type=jnp.float32)
    for g in range(1, g_heads):
        part = part + jnp.dot(ctx_ref[g], wo_ref[g],
                              preferred_element_type=jnp.float32)
    acc_ref[...] += part

    @pl.when(k == pl.num_programs(1) - 1)
    def _():
        # residual_add = attn_out + attn_ob + layer input (pre-LN skip connection)
        radd = acc_ref[...] + ob_ref[...] + res_ref[...].astype(jnp.float32)
        # TODO(synk): emitting radd in bf16 would halve combine-stage HBM traffic;
        # kept fp32 for output parity with the fp32 reference.
        radd_ref[...] = radd.astype(radd_ref.dtype)
        mean = jnp.mean(radd, axis=-1, keepdims=True)
        var = jnp.mean(jnp.square(radd - mean), axis=-1, keepdims=True)
        ln = (radd - mean) * jax.lax.rsqrt(var + eps) * nw_ref[...] + nb_ref[...]
        ln_ref[...] = ln.astype(ln_ref.dtype)
        # fp32 gate GEMM (tiny, lane-padded to 128) so routing argmax matches fp32.
        logit_ref[...] = jnp.dot(ln, gw_ref[...],
                                 preferred_element_type=jnp.float32)


def pallas_outproj_ln_gate(ctx, wo_heads, attn_ob, x2d, attn_nw, attn_nb,
                           gate_w_pad, eps, G):
    H, T, D = ctx.shape
    M = wo_heads.shape[-1]
    GP = gate_w_pad.shape[1]
    NG = H // G
    tm = _row_tile(T, _ROW_TARGET)
    out_shapes = (jax.ShapeDtypeStruct((T, M), jnp.float32),     # residual_add
                  jax.ShapeDtypeStruct((T, M), jnp.bfloat16),    # attn_ln
                  jax.ShapeDtypeStruct((T, GP), jnp.float32))    # gate logits
    return pl.pallas_call(
        functools.partial(_outproj_ln_gate_kernel, eps=eps, g_heads=G),
        out_shape=out_shapes,
        grid=(T // tm, NG),
        in_specs=[
            pl.BlockSpec((G, tm, D), lambda i, k: (k, i, 0)),    # ctx head-group
            pl.BlockSpec((G, D, M), lambda i, k: (k, 0, 0)),     # Wo head-group
            pl.BlockSpec((1, M), lambda i, k: (0, 0)),           # attn_ob
            pl.BlockSpec((tm, M), lambda i, k: (i, 0)),          # layer input residual
            pl.BlockSpec((1, M), lambda i, k: (0, 0)),           # attn_nw
            pl.BlockSpec((1, M), lambda i, k: (0, 0)),           # attn_nb
            pl.BlockSpec((M, GP), lambda i, k: (0, 0)),          # padded gate weight
        ],
        out_specs=(
            pl.BlockSpec((tm, M), lambda i, k: (i, 0)),
            pl.BlockSpec((tm, M), lambda i, k: (i, 0)),
            pl.BlockSpec((tm, GP), lambda i, k: (i, 0)),
        ),
        scratch_shapes=[pltpu.VMEM((tm, M), jnp.float32)],
        compiler_params=pltpu.CompilerParams(
            dimension_semantics=("parallel", "arbitrary"),
            vmem_limit_bytes=_VMEM_LIMIT),
    )(ctx, wo_heads, attn_ob.reshape(1, M), x2d, attn_nw.reshape(1, M),
      attn_nb.reshape(1, M), gate_w_pad)


# ---------------- MoE dispatch / combine (batched manual-DMA gather) ----------

def _dispatch_kernel(src_ref, x_hbm, valid_ref, o_ref, buf, sems, *, sb):
    base = pl.program_id(0) * sb
    for i in range(sb):                           # sb row DMAs in flight
        pltpu.make_async_copy(x_hbm.at[src_ref[base + i]], buf.at[i],
                              sems.at[i]).start()
    for i in range(sb):
        pltpu.make_async_copy(x_hbm.at[0], buf.at[i], sems.at[i]).wait()
    o_ref[...] = buf[...] * valid_ref[...]        # zero the unfilled slots


def pallas_dispatch(attn_ln, disp_src, disp_valid, E, C):
    """Gather token rows into (E*C, M) slots; sb slots per grid step via DMA."""
    T, M = attn_ln.shape
    EC = E * C
    sb = _row_tile(EC, 32)
    gs = pltpu.PrefetchScalarGridSpec(
        num_scalar_prefetch=1,
        grid=(EC // sb,),
        in_specs=[pl.BlockSpec(memory_space=pl.ANY),            # attn_ln stays in HBM
                  pl.BlockSpec((sb, 1), lambda i, src: (i, 0))],
        out_specs=pl.BlockSpec((sb, M), lambda i, src: (i, 0)),
        scratch_shapes=[pltpu.VMEM((sb, M), attn_ln.dtype),
                        pltpu.SemaphoreType.DMA((sb,))])
    out = pl.pallas_call(
        functools.partial(_dispatch_kernel, sb=sb),
        out_shape=jax.ShapeDtypeStruct((EC, M), attn_ln.dtype),
        grid_spec=gs,
        compiler_params=pltpu.CompilerParams(dimension_semantics=("arbitrary",)),
    )(disp_src, attn_ln, disp_valid)
    return out.reshape(E, C, M)


def _combine_kernel(src_ref, eo_hbm, res_ref, sc_ref, o_ref, buf, sems, *, tb):
    base = pl.program_id(0) * tb
    for i in range(tb):
        pltpu.make_async_copy(eo_hbm.at[src_ref[base + i]], buf.at[i],
                              sems.at[i]).start()
    for i in range(tb):
        pltpu.make_async_copy(eo_hbm.at[0], buf.at[i], sems.at[i]).wait()
    o_ref[...] = (buf[...].astype(jnp.float32) * sc_ref[...]
                  + res_ref[...]).astype(o_ref.dtype)


def pallas_combine(expert_out_2d, residual_add, comb_src, comb_scale):
    """Per-token gather of its expert output * gate prob + residual, tb tokens/step."""
    EC, M = expert_out_2d.shape
    T = residual_add.shape[0]
    tb = _row_tile(T, 32)
    gs = pltpu.PrefetchScalarGridSpec(
        num_scalar_prefetch=1,
        grid=(T // tb,),
        in_specs=[pl.BlockSpec(memory_space=pl.ANY),            # expert_out in HBM
                  pl.BlockSpec((tb, M), lambda t, src: (t, 0)),  # residual block
                  pl.BlockSpec((tb, 1), lambda t, src: (t, 0))],  # gate scales block
        out_specs=pl.BlockSpec((tb, M), lambda t, src: (t, 0)),
        scratch_shapes=[pltpu.VMEM((tb, M), expert_out_2d.dtype),
                        pltpu.SemaphoreType.DMA((tb,))])
    return pl.pallas_call(
        functools.partial(_combine_kernel, tb=tb),
        out_shape=jax.ShapeDtypeStruct((T, M), jnp.float32),
        grid_spec=gs,
        compiler_params=pltpu.CompilerParams(dimension_semantics=("arbitrary",)),
    )(comb_src, expert_out_2d, residual_add, comb_scale.reshape(T, 1))


# ----------------------------- expert MLP (C & I tiled) -----------------------

def _expert_mlp_kernel(x_ref, w1_ref, b1_ref, w2_ref, b2_ref, o_ref, acc_ref):
    j = pl.program_id(2)

    @pl.when(j == 0)
    def _():
        acc_ref[...] = jnp.zeros_like(acc_ref)

    h = jnp.dot(x_ref[0], w1_ref[0], preferred_element_type=jnp.float32) + b1_ref[0]
    h = _gelu_tanh(h)                                              # fp32 VPU/EUP
    acc_ref[...] += jnp.dot(h.astype(jnp.bfloat16), w2_ref[0],
                            preferred_element_type=jnp.float32)

    @pl.when(j == pl.num_programs(2) - 1)
    def _():
        o_ref[0] = (acc_ref[...] + b2_ref[0]).astype(o_ref.dtype)


def pallas_expert_mlp(x, w1, b1, w2, b2):
    """x: (E, C, M) bf16; per-expert gelu(x@W1+b1)@W2+b2, tiled over C and I."""
    E, C, M = x.shape
    I = w1.shape[-1]
    tc = _row_tile(C, 256)          # capacity tile keeps VMEM under the v7x budget
    ti = _lane_tile(I, 512)
    # TODO(synk): optional fp8 expert weights (per-channel scale) on v7x.
    return pl.pallas_call(
        _expert_mlp_kernel,
        out_shape=jax.ShapeDtypeStruct((E, C, M), jnp.bfloat16),
        grid=(E, C // tc, I // ti),
        in_specs=[
            pl.BlockSpec((1, tc, M), lambda e, c, j: (e, c, 0)),
            pl.BlockSpec((1, M, ti), lambda e, c, j: (e, 0, j)),
            pl.BlockSpec((1, 1, ti), lambda e, c, j: (e, 0, j)),
            pl.BlockSpec((1, ti, M), lambda e, c, j: (e, j, 0)),
            pl.BlockSpec((1, 1, M), lambda e, c, j: (e, 0, 0)),
        ],
        out_specs=pl.BlockSpec((1, tc, M), lambda e, c, j: (e, c, 0)),
        scratch_shapes=[pltpu.VMEM((tc, M), jnp.float32)],
        compiler_params=pltpu.CompilerParams(
            dimension_semantics=("parallel", "parallel", "arbitrary"),
            vmem_limit_bytes=_VMEM_LIMIT),
    )(x, w1, b1, w2, b2)


# ------------------------- standalone LayerNorm (post-LN path) ----------------

def _layernorm_kernel(x_ref, w_ref, b_ref, o_ref, *, eps):
    x = x_ref[...].astype(jnp.float32)
    mean = jnp.mean(x, axis=-1, keepdims=True)
    var = jnp.mean(jnp.square(x - mean), axis=-1, keepdims=True)
    y = (x - mean) * jax.lax.rsqrt(var + eps)
    o_ref[...] = (y * w_ref[...] + b_ref[...]).astype(o_ref.dtype)


def pallas_layernorm(x2d, w, b, eps):
    T, M = x2d.shape
    tm = _row_tile(T, _ROW_TARGET)
    return pl.pallas_call(
        functools.partial(_layernorm_kernel, eps=eps),
        out_shape=jax.ShapeDtypeStruct((T, M), x2d.dtype),
        grid=(T // tm,),
        in_specs=[pl.BlockSpec((tm, M), lambda i: (i, 0)),
                  pl.BlockSpec((1, M), lambda i: (0, 0)),
                  pl.BlockSpec((1, M), lambda i: (0, 0))],
        out_specs=pl.BlockSpec((tm, M), lambda i: (i, 0)),
        compiler_params=pltpu.CompilerParams(dimension_semantics=("parallel",)),
    )(x2d, w.reshape(1, M), b.reshape(1, M))


# ------------------------------------ forward ---------------------------------

def deepspeed_moe_inference_forward(x, params, cfg):
    B, S, M = x.shape
    T = B * S
    H = cfg["heads"]
    D = M // H
    E = cfg["moe_experts"]
    eps = cfg["epsilon"]
    capacity = max(cfg["min_capacity"],
                   math.ceil((T / E) * cfg["capacity_factor"]))
    x2d = x.reshape(T, M)
    G = _head_group(H, D)      # heads per attention / out-proj K group

    # one-time bf16 / layout transforms of weights (in deployment, stored this way)
    scale = 1.0 / math.sqrt(D)
    qsc = jnp.concatenate([jnp.full((H, 1, 1), scale, jnp.float32),
                           jnp.ones((2 * H, 1, 1), jnp.float32)], axis=0)
    qkv_w_heads = (params["attn_qkvw"].reshape(M, 3, H, D)
                   .transpose(1, 2, 0, 3).reshape(3 * H, M, D) * qsc
                   ).astype(jnp.bfloat16)                    # 1/sqrt(D) folded into Q
    qkv_b_heads = params["attn_qkvb"].reshape(3 * H, 1, D) * qsc
    wo_heads = params["attn_ow"].reshape(H, D, M).astype(jnp.bfloat16)
    GP = max(128, ((E + 127) // 128) * 128)
    gate_w_pad = jnp.zeros((M, GP), jnp.float32).at[:, :E].set(params["gate_w"])
    w1 = params["inter_w"].astype(jnp.bfloat16)
    w2 = params["output_w"].astype(jnp.bfloat16)

    # ---- fused pre-LN (cached per row tile) + QKV projection -> (3H, T, D) ----
    qkv_heads = pallas_ln_qkv(x2d, params["norm_w"], params["norm_b"],
                              qkv_w_heads, qkv_b_heads, eps)

    # ---- flash attention, G heads per step -> ctx (H, T, D) bf16 ----
    ctx = pallas_flash_attention(qkv_heads, B, S, H, D, G)

    # ---- fused output proj + attn_ob + input residual + LN2 + gate logits ----
    residual_add, attn_ln, logits_pad = pallas_outproj_ln_gate(
        ctx, wo_heads, params["attn_ob"], x2d, params["attn_nw"],
        params["attn_nb"], gate_w_pad, eps, G)

    # ---- top-1 gate combinatorics (plain JAX glue: argmax/cumsum/one-hot) ----
    logits = logits_pad[:, :E]
    gates = jax.nn.softmax(logits, axis=-1)
    expert_idx = jnp.argmax(gates, axis=-1)
    mask1 = jax.nn.one_hot(expert_idx, E, dtype=jnp.int32)
    locations1 = jnp.cumsum(mask1, axis=0) - 1
    mask1 = mask1 * (locations1 < capacity).astype(jnp.int32)
    kept = jnp.sum(mask1, axis=-1) > 0
    slot = jnp.sum(locations1 * mask1, axis=-1)
    gate_val = jnp.sum(gates * mask1.astype(gates.dtype), axis=-1)
    flat_slot = expert_idx.astype(jnp.int32) * capacity + slot.astype(jnp.int32)
    flat_slot_scatter = jnp.where(kept, flat_slot, E * capacity)   # OOB -> dropped
    token_for_slot = (jnp.full((E * capacity,), -1, jnp.int32)
                      .at[flat_slot_scatter]
                      .set(jnp.arange(T, dtype=jnp.int32), mode="drop"))
    disp_src = jnp.maximum(token_for_slot, 0)
    disp_valid = (token_for_slot >= 0).astype(jnp.bfloat16).reshape(E * capacity, 1)
    comb_src = jnp.where(kept, flat_slot, 0).astype(jnp.int32)
    comb_scale = jnp.where(kept, gate_val, 0.0).astype(jnp.float32)

    # ---- dispatch (batched DMA gather, replaces dense (E*C,T)@(T,M) GEMM) ----
    dispatched = pallas_dispatch(attn_ln, disp_src, disp_valid, E, capacity)

    # ---- expert execution (single ep group) ----
    expert_out = pallas_expert_mlp(dispatched, w1, params["inter_b"],
                                   w2, params["output_b"])          # (E, C, M) bf16

    # ---- combine gather * gate prob + residual (bias_residual fused) ----
    out2d = pallas_combine(expert_out.reshape(E * capacity, M),
                           residual_add, comb_src, comb_scale)

    if not cfg["pre_layer_norm"]:
        out2d = pallas_layernorm(out2d, params["norm_w"], params["norm_b"], eps)
    return out2d.reshape(B, S, M)


# ------------------------------------ params ----------------------------------

def init_params(key, cfg):
    M = cfg["hidden_size"]
    I = cfg["intermediate_size"]
    E = cfg["moe_experts"]
    ks = jax.random.split(key, 13)
    sc = 0.05
    p = {}
    p["norm_w"] = 1.0 + 0.01 * jax.random.normal(ks[0], (M,), jnp.float32)
    p["norm_b"] = 0.01 * jax.random.normal(ks[1], (M,), jnp.float32)
    p["attn_nw"] = 1.0 + 0.01 * jax.random.normal(ks[2], (M,), jnp.float32)
    p["attn_nb"] = 0.01 * jax.random.normal(ks[3], (M,), jnp.float32)
    p["attn_qkvw"] = sc * jax.random.normal(ks[4], (M, 3 * M), jnp.float32)
    p["attn_qkvb"] = sc * jax.random.normal(ks[5], (3 * M,), jnp.float32)
    p["attn_ow"] = sc * jax.random.normal(ks[6], (M, M), jnp.float32)
    p["attn_ob"] = sc * jax.random.normal(ks[7], (M,), jnp.float32)
    p["gate_w"] = sc * jax.random.normal(ks[8], (M, E), jnp.float32)
    p["inter_w"] = sc * jax.random.normal(ks[9], (E, M, I), jnp.float32)
    p["inter_b"] = sc * jax.random.normal(ks[10], (E, 1, I), jnp.float32)
    p["output_w"] = sc * jax.random.normal(ks[11], (E, I, M), jnp.float32)
    p["output_b"] = sc * jax.random.normal(ks[12], (E, 1, M), jnp.float32)
    return p


# ------------------------------------- main ------------------------------------

if __name__ == "__main__":
    cfg = dict(
        hidden_size=32,
        heads=4,
        intermediate_size=64,
        moe_experts=4,        # == global_experts (single expert-parallel group)
        k=1,
        capacity_factor=1.0,
        min_capacity=16,      # == num tokens -> no token dropping (deterministic)
        epsilon=1e-6,
        pre_layer_norm=True,
        fp16=False,
    )
    B, S = 2, 8

    key = jax.random.PRNGKey(0)
    k_in, k_par = jax.random.split(key)
    x = jax.random.normal(k_in, (B, S, cfg["hidden_size"]), jnp.float32)
    params = init_params(k_par, cfg)

    out = deepspeed_moe_inference_forward(x, params, cfg)
    out = jax.block_until_ready(out)
    assert out.shape == (B, S, cfg["hidden_size"])
    assert not bool(jnp.isnan(out).any())
    print("KERNEL_OK")
</pallas_src>

<mosaic_0001>
module attributes {stable_mosaic.version = 11 : i64} {
  func.func @_ln_qkv_kernel(%arg0: i32, %arg1: i32, %arg2: memref<8x32xf32, #tpu.memory_space<vmem>>, %arg3: memref<1x32xf32, #tpu.memory_space<vmem>>, %arg4: memref<1x32xf32, #tpu.memory_space<vmem>>, %arg5: memref<1x32x8xbf16, #tpu.memory_space<vmem>>, %arg6: memref<1x1x8xf32, #tpu.memory_space<vmem>>, %arg7: memref<1x8x8xbf16, #tpu.memory_space<vmem>>, %arg8: memref<8x32xbf16, #tpu.memory_space<vmem>>) attributes {dimension_semantics = [#tpu.dimension_semantics<parallel>, #tpu.dimension_semantics<arbitrary>], iteration_bounds = array<i64: 2, 12>, scalar_prefetch = 0 : i64, scratch_operands = 1 : i64, tpu.core_type = #tpu.core_type<tc>, window_params = [{transform_indices = @transform_0, window_bounds = array<i64: 8, 32>}, {pipeline_mode = #tpu.pipeline_mode<synchronous>, transform_indices = @transform_1, window_bounds = array<i64: 1, 32>}, {pipeline_mode = #tpu.pipeline_mode<synchronous>, transform_indices = @transform_2, window_bounds = array<i64: 1, 32>}, {transform_indices = @transform_3, window_bounds = array<i64: 1, 32, 8>}, {transform_indices = @transform_4, window_bounds = array<i64: 1, 1, 8>}, {transform_indices = @transform_5, window_bounds = array<i64: 1, 8, 8>}]} {
    %c0_i32 = arith.constant 0 : i32
    %0 = arith.cmpi eq, %arg1, %c0_i32 : i32
    %1 = arith.extui %0 : i1 to i32
    %c0_i32_0 = arith.constant 0 : i32
    %2 = arith.cmpi ne, %1, %c0_i32_0 : i32
    scf.if %2 {
      %c0_11 = arith.constant 0 : index
      %c0_12 = arith.constant 0 : index
      %15 = vector.load %arg2[%c0_11, %c0_12] : memref<8x32xf32, #tpu.memory_space<vmem>>, vector<8x32xf32>
      %cst_13 = arith.constant dense<0.000000e+00> : vector<8xf32>
      %16 = vector.multi_reduction <add>, %15, %cst_13 [1] : vector<8x32xf32> to vector<8xf32>
      %17 = vector.shape_cast %16 : vector<8xf32> to vector<8x1xf32>
      %cst_14 = arith.constant 3.200000e+01 : f32
      %18 = vector.broadcast %cst_14 : f32 to vector<8x1xf32>
      %19 = arith.divf %17, %18 : vector<8x1xf32>
      %20 = vector.broadcast %19 : vector<8x1xf32> to vector<8x32xf32>
      %21 = arith.subf %15, %20 : vector<8x32xf32>
      %22 = arith.mulf %21, %21 : vector<8x32xf32>
      %cst_15 = arith.constant dense<0.000000e+00> : vector<8xf32>
      %23 = vector.multi_reduction <add>, %22, %cst_15 [1] : vector<8x32xf32> to vector<8xf32>
      %24 = vector.shape_cast %23 : vector<8xf32> to vector<8x1xf32>
      %cst_16 = arith.constant 3.200000e+01 : f32
      %25 = vector.broadcast %cst_16 : f32 to vector<8x1xf32>
      %26 = arith.divf %24, %25 : vector<8x1xf32>
      %27 = vector.broadcast %19 : vector<8x1xf32> to vector<8x32xf32>
      %28 = arith.subf %15, %27 : vector<8x32xf32>
      %cst_17 = arith.constant 9.99999997E-7 : f32
      %29 = vector.broadcast %cst_17 : f32 to vector<8x1xf32>
      %30 = arith.addf %26, %29 : vector<8x1xf32>
      %31 = math.rsqrt %30 : vector<8x1xf32>
      %32 = vector.broadcast %31 : vector<8x1xf32> to vector<8x32xf32>
      %33 = arith.mulf %28, %32 : vector<8x32xf32>
      %c0_18 = arith.constant 0 : index
      %c0_19 = arith.constant 0 : index
      %34 = vector.load %arg3[%c0_18, %c0_19] : memref<1x32xf32, #tpu.memory_space<vmem>>, vector<1x32xf32>
      %35 = vector.broadcast %34 : vector<1x32xf32> to vector<8x32xf32>
      %36 = arith.mulf %33, %35 : vector<8x32xf32>
      %c0_20 = arith.constant 0 : index
      %c0_21 = arith.constant 0 : index
      %37 = vector.load %arg4[%c0_20, %c0_21] : memref<1x32xf32, #tpu.memory_space<vmem>>, vector<1x32xf32>
      %38 = vector.broadcast %37 : vector<1x32xf32> to vector<8x32xf32>
      %39 = arith.addf %36, %38 : vector<8x32xf32>
      %40 = arith.truncf %39 : vector<8x32xf32> to vector<8x32xbf16>
      %c0_22 = arith.constant 0 : index
      %c0_23 = arith.constant 0 : index
      %41 = vector.load %arg8[%c0_22, %c0_23] : memref<8x32xbf16, #tpu.memory_space<vmem>>, vector<8x32xbf16>
      tpu.vector_store %arg8[%c0_22, %c0_23], %40 {strides = array<i32>} : memref<8x32xbf16, #tpu.memory_space<vmem>>, vector<8x32xbf16>,
    } else {
    }
    %c0 = arith.constant 0 : index
    %c0_1 = arith.constant 0 : index
    %3 = vector.load %arg8[%c0, %c0_1] : memref<8x32xbf16, #tpu.memory_space<vmem>>, vector<8x32xbf16>
    %c0_2 = arith.constant 0 : index
    %c0_3 = arith.constant 0 : index
    %c0_4 = arith.constant 0 : index
    %4 = vector.load %arg5[%c0_2, %c0_3, %c0_4] : memref<1x32x8xbf16, #tpu.memory_space<vmem>>, vector<1x32x8xbf16>
    %5 = vector.shape_cast %4 : vector<1x32x8xbf16> to vector<32x8xbf16>
    %cst = arith.constant dense<0.000000e+00> : vector<8x8xf32>
    %6 = tpu.matmul %3, %5, %cst {dimension_numbers = #tpu.dot_dimension_numbers<[1], [0], [0], [1], [0, 0, 1, 1], [], []>} : vector<8x32xbf16>, vector<32x8xbf16>, vector<8x8xf32> -> vector<8x8xf32>
    %c0_5 = arith.constant 0 : index
    %c0_6 = arith.constant 0 : index
    %c0_7 = arith.constant 0 : index
    %7 = vector.load %arg6[%c0_5, %c0_6, %c0_7] : memref<1x1x8xf32, #tpu.memory_space<vmem>>, vector<1x1x8xf32>
    %8 = vector.shape_cast %7 : vector<1x1x8xf32> to vector<1x8xf32>
    %9 = vector.broadcast %8 : vector<1x8xf32> to vector<8x8xf32>
    %10 = arith.addf %6, %9 : vector<8x8xf32>
    %11 = arith.truncf %10 : vector<8x8xf32> to vector<8x8xbf16>
    %c0_8 = arith.constant 0 : index
    %c0_9 = arith.constant 0 : index
    %c0_10 = arith.constant 0 : index
    %12 = vector.load %arg7[%c0_8, %c0_9, %c0_10] : memref<1x8x8xbf16, #tpu.memory_space<vmem>>, vector<1x8x8xbf16>
    %13 = vector.shape_cast %12 : vector<1x8x8xbf16> to vector<8x8xbf16>
    %14 = vector.shape_cast %11 : vector<8x8xbf16> to vector<1x8x8xbf16>
    tpu.vector_store %arg7[%c0_8, %c0_9, %c0_10], %14 {strides = array<i32>} : memref<1x8x8xbf16, #tpu.memory_space<vmem>>, vector<1x8x8xbf16>,
    return
  }
  func.func @transform_0(%arg0: i32, %arg1: i32) -> (i32, i32) {
    %c0_i32 = arith.constant 0 : i32
    %c0_i32_0 = arith.constant 0 : i32
    return %arg0, %c0_i32 : i32, i32
  }
  func.func @transform_1(%arg0: i32, %arg1: i32) -> (i32, i32) {
    %c0_i32 = arith.constant 0 : i32
    %c0_i32_0 = arith.constant 0 : i32
    %c0_i32_1 = arith.constant 0 : i32
    return %c0_i32, %c0_i32_0 : i32, i32
  }
  func.func @transform_2(%arg0: i32, %arg1: i32) -> (i32, i32) {
    %c0_i32 = arith.constant 0 : i32
    %c0_i32_0 = arith.constant 0 : i32
    %c0_i32_1 = arith.constant 0 : i32
    return %c0_i32, %c0_i32_0 : i32, i32
  }
  func.func @transform_3(%arg0: i32, %arg1: i32) -> (i32, i32, i32) {
    %c0_i32 = arith.constant 0 : i32
    %c0_i32_0 = arith.constant 0 : i32
    %c0_i32_1 = arith.constant 0 : i32
    return %arg1, %c0_i32, %c0_i32_0 : i32, i32, i32
  }
  func.func @transform_4(%arg0: i32, %arg1: i32) -> (i32, i32, i32) {
    %c0_i32 = arith.constant 0 : i32
    %c0_i32_0 = arith.constant 0 : i32
    %c0_i32_1 = arith.constant 0 : i32
    return %arg1, %c0_i32, %c0_i32_0 : i32, i32, i32
  }
  func.func @transform_5(%arg0: i32, %arg1: i32) -> (i32, i32, i32) {
    %c0_i32 = arith.constant 0 : i32
    %c0_i32_0 = arith.constant 0 : i32
    return %arg1, %arg0, %c0_i32 : i32, i32, i32
  }
}

</mosaic_0001>

<llo_original>
// kernel: tpu_custom_call.1
$region0: #{tpu_custom_call.1}
  #allocation0 [shape = 'u32[]', space=smem, size = 0x4, offset = 0x4, fixed_abs, tag = 'smem constant byte address 0x4 - core index']
  #allocation1 [shape = 'u32[144,128]{1,0:T(1,128)}', space=vmem, size = 0x12000, scoped, tag = 'internal scratch']
  #allocation2 [shape = 'bf16[8,32]{1,0:T(8,128)(2,1)}', space=vmem, size = 0x800, scoped, tag = 'scratch operand']
  %s0 = inlined_call_operand.vmem [shape: f32[16,32], index: 0, kind: input, shape index: {}]
  %s1 = inlined_call_operand.vmem [shape: f32[1,32], index: 1, kind: input, shape index: {}]
  %s2 = inlined_call_operand.vmem [shape: f32[1,32], index: 2, kind: input, shape index: {}]
  %s3 = inlined_call_operand.vmem [shape: bf16[12,32,8], index: 3, kind: input, shape index: {}]
  %s4 = inlined_call_operand.vmem [shape: f32[12,1,8], index: 4, kind: input, shape index: {}]
  %s5 = inlined_call_operand.vmem [shape: bf16[12,16,8], index: 5, kind: output, shape index: {}]
  %s6 = sld [smem:[#allocation0]]
  $region57: #{tpu_custom_call.1} parent=0
    _
  %s8 = ssub.s32 1, %s6
  %s9 = scalar_select 0, %s8, %s6
  loop: start=0, step=1, limit=26
  $region2: #{tpu_custom_call.1} parent=0 // loop_pre_header
    _
  $region3: #{tpu_custom_call.1} parent=0 // loop_header
    %s11 = sphi 0, %s15
    %p12 = scmp.ge.s32.totalorder %s11, 26
    %s18 = sphi 0, %s30
    %s19 = sphi 0, %s26
    %s20 = sphi 0, %s18
    %s21 = sphi 0, %s19
    %s22 = sphi 0, %s20
    %s23 = sphi 0, %s21
    %s33 = sphi 0, %s35
    %s36 = sphi 0, %s33
    %s37 = sphi 0, %s36
    %s53 = sphi 0, %s37
    %s57 = sphi 0, %s57
    %s59 = sphi 0, %s57
    %s60 = sphi 0, %s59
    %s74 = sphi 0, %s60
    %s78 = sphi 0, %s78
    %s80 = sphi 0, %s78
    %s81 = sphi 0, %s80
    %s95 = sphi 0, %s81
    %s101 = sphi 0, %s103
    %s104 = sphi 0, %s101
    %s105 = sphi 0, %s104
    %s121 = sphi 0, %s105
    %s127 = sphi 0, %s129
    %s130 = sphi 0, %s127
    %s131 = sphi 0, %s130
    %s147 = sphi 0, %s131
    %s155 = sphi 0, %s157
    %s158 = sphi 0, %s155
    %s159 = sphi 0, %s158
    %s175 = sphi 0, %s159
  $region4: #{tpu_custom_call.1} parent=0 // loop_header_branch
    %14 = sbr.rel (%p12) target = $region8
  $region5: #{tpu_custom_call.1} parent=0 // loop_body
    %s16 = ssub.s32 %s11, 1
    %s17 = ssub.s32 %s11, 2
    %s24 = sadd.s32 1, %s19
    %p25 = scmp.ge.s32.totalorder %s24, 12
    %s26 = scalar_select %p25, 0, %s24
    %s27 = sadd.s32 1, %s18
    %s28 = scalar_select %p25, %s27, %s18
    %p29 = scmp.ge.s32.totalorder %s28, 2
    %s30 = scalar_select %p29, 0, %s28
    %s31 = ssub.s32 %s18, %s30
    %p32 = scmp.eq.s32.totalorder %s31, 0
    %s34 = sadd.s32 %s33, 1
    %s35 = scalar_select %p32, %s33, %s34
    %p38 = pneg %p32
    %p39 = scmp.eq.s32.totalorder %s11, 23
    %p40 = por %p38, %p39
    %p41 = scmp.ne.s32.totalorder %s33, %s36
    %p42 = scmp.eq.s32.totalorder %s11, 0
    %p43 = por %p41, %p42
    %p44 = scmp.ne.s32.totalorder %s33, %s36
    %p45 = scmp.eq.s32.totalorder %s16, 23
    %p46 = por %p44, %p45
    %p47 = scmp.ne.s32.totalorder %s36, %s37
    %p48 = scmp.eq.s32.totalorder %s16, 0
    %p49 = por %p47, %p48
    %p50 = scmp.ne.s32.totalorder %s36, %s37
    %p51 = scmp.eq.s32.totalorder %s17, 23
    %p52 = por %p50, %p51
    %p54 = scmp.ne.s32.totalorder %s37, %s53
    %p55 = scmp.eq.s32.totalorder %s17, 0
    %p56 = por %p54, %p55
    %s58 = sadd.s32 %s57, 1
    %p61 = scmp.eq.s32.totalorder %s11, 23
    %p62 = scmp.ne.s32.totalorder %s57, %s59
    %p63 = scmp.eq.s32.totalorder %s11, 0
    %p64 = por %p62, %p63
    %p65 = scmp.ne.s32.totalorder %s57, %s59
    %p66 = scmp.eq.s32.totalorder %s16, 23
    %p67 = por %p65, %p66
    %p68 = scmp.ne.s32.totalorder %s59, %s60
    %p69 = scmp.eq.s32.totalorder %s16, 0
    %p70 = por %p68, %p69
    %p71 = scmp.ne.s32.totalorder %s59, %s60
    %p72 = scmp.eq.s32.totalorder %s17, 23
    %p73 = por %p71, %p72
    %p75 = scmp.ne.s32.totalorder %s60, %s74
    %p76 = scmp.eq.s32.totalorder %s17, 0
    %p77 = por %p75, %p76
    %s79 = sadd.s32 %s78, 1
    %p82 = scmp.eq.s32.totalorder %s11, 23
    %p83 = scmp.ne.s32.totalorder %s78, %s80
    %p84 = scmp.eq.s32.totalorder %s11, 0
    %p85 = por %p83, %p84
    %p86 = scmp.ne.s32.totalorder %s78, %s80
    %p87 = scmp.eq.s32.totalorder %s16, 23
    %p88 = por %p86, %p87
    %p89 = scmp.ne.s32.totalorder %s80, %s81
    %p90 = scmp.eq.s32.totalorder %s16, 0
    %p91 = por %p89, %p90
    %p92 = scmp.ne.s32.totalorder %s80, %s81
    %p93 = scmp.eq.s32.totalorder %s17, 23
    %p94 = por %p92, %p93
    %p96 = scmp.ne.s32.totalorder %s81, %s95
    %p97 = scmp.eq.s32.totalorder %s17, 0
    %p98 = por %p96, %p97
    %s99 = ssub.s32 %s19, %s26
    %p100 = scmp.eq.s32.totalorder %s99, 0
    %s102 = sadd.s32 %s101, 1
    %s103 = scalar_select %p100, %s101, %s102
    %p106 = pneg %p100
    %p107 = scmp.eq.s32.totalorder %s11, 23
    %p108 = por %p106, %p107
    %p109 = scmp.ne.s32.totalorder %s101, %s104
    %p110 = scmp.eq.s32.totalorder %s11, 0
    %p111 = por %p109, %p110
    %p112 = scmp.ne.s32.totalorder %s101, %s104
    %p113 = scmp.eq.s32.totalorder %s16, 23
    %p114 = por %p112, %p113
    %p115 = scmp.ne.s32.totalorder %s104, %s105
    %p116 = scmp.eq.s32.totalorder %s16, 0
    %p117 = por %p115, %p116
    %p118 = scmp.ne.s32.totalorder %s104, %s105
    %p119 = scmp.eq.s32.totalorder %s17, 23
    %p120 = por %p118, %p119
    %p122 = scmp.ne.s32.totalorder %s105, %s121
    %p123 = scmp.eq.s32.totalorder %s17, 0
    %p124 = por %p122, %p123
    %s125 = ssub.s32 %s19, %s26
    %p126 = scmp.eq.s32.totalorder %s125, 0
    %s128 = sadd.s32 %s127, 1
    %s129 = scalar_select %p126, %s127, %s128
    %p132 = pneg %p126
    %p133 = scmp.eq.s32.totalorder %s11, 23
    %p134 = por %p132, %p133
    %p135 = scmp.ne.s32.totalorder %s127, %s130
    %p136 = scmp.eq.s32.totalorder %s11, 0
    %p137 = por %p135, %p136
    %p138 = scmp.ne.s32.totalorder %s127, %s130
    %p139 = scmp.eq.s32.totalorder %s16, 23
    %p140 = por %p138, %p139
    %p141 = scmp.ne.s32.totalorder %s130, %s131
    %p142 = scmp.eq.s32.totalorder %s16, 0
    %p143 = por %p141, %p142
    %p144 = scmp.ne.s32.totalorder %s130, %s131
    %p145 = scmp.eq.s32.totalorder %s17, 23
    %p146 = por %p144, %p145
    %p148 = scmp.ne.s32.totalorder %s131, %s147
    %p149 = scmp.eq.s32.totalorder %s17, 0
    %p150 = por %p148, %p149
    %s151 = ssub.s32 %s19, %s26
    %s152 = ssub.s32 %s18, %s30
    %s153 = sor.u32 %s151, %s152
    %p154 = scmp.eq.s32.totalorder %s153, 0
    %s156 = sadd.s32 %s155, 1
    %s157 = scalar_select %p154, %s155, %s156
    %p160 = pneg %p154
    %p161 = scmp.eq.s32.totalorder %s11, 23
    %p162 = por %p160, %p161
    %p163 = scmp.ne.s32.totalorder %s155, %s158
    %p164 = scmp.eq.s32.totalorder %s11, 0
    %p165 = por %p163, %p164
    %p166 = scmp.ne.s32.totalorder %s155, %s158
    %p167 = scmp.eq.s32.totalorder %s16, 23
    %p168 = por %p166, %p167
    %p169 = scmp.ne.s32.totalorder %s158, %s159
    %p170 = scmp.eq.s32.totalorder %s16, 0
    %p171 = por %p169, %p170
    %p172 = scmp.ne.s32.totalorder %s158, %s159
    %p173 = scmp.eq.s32.totalorder %s17, 23
    %p174 = por %p172, %p173
    %p176 = scmp.ne.s32.totalorder %s159, %s175
    %p177 = scmp.eq.s32.totalorder %s17, 0
    %p178 = por %p176, %p177
    %p179 = scmp.le.s32.totalorder 1, %s11
    %p180 = scmp.lt.s32.totalorder %s11, 25
    %p181 = pnand %p179, %p180
    %p182 = pneg %p181
    // Predicated region
    $region9: #{tpu_custom_call.1} parent=5 // pred_check
      _
    $region10: #{tpu_custom_call.1} parent=5 // pred_check_branch
      %184 = sbr.rel (%p181) target = $region12
    $region11: #{tpu_custom_call.1} parent=5 // pred_region
      %s185 = ssub.s32 %s11, 1
      // Predicated region
      $region13: #{tpu_custom_call.1} parent=11 // pred_check
        %p186 = pneg %p70
      $region14: #{tpu_custom_call.1} parent=11 // pred_check_branch
        %188 = sbr.rel (%p186) target = $region16
      $region15: #{tpu_custom_call.1} parent=11 // pred_region
        _
      $region16: #{tpu_custom_call.1} parent=11 // pred_fallthru
        _
      // Predicated region
      $region17: #{tpu_custom_call.1} parent=11 // pred_check
        %p189 = pneg %p91
      $region18: #{tpu_custom_call.1} parent=11 // pred_check_branch
        %191 = sbr.rel (%p189) target = $region20
      $region19: #{tpu_custom_call.1} parent=11 // pred_region
        _
      $region20: #{tpu_custom_call.1} parent=11 // pred_fallthru
        _
    $region12: #{tpu_custom_call.1} parent=5 // pred_fallthru
      _
    %p192 = scmp.lt.s32.totalorder %s11, 24
    // Predicated region
    $region21: #{tpu_custom_call.1} parent=5 // pred_check
      %p193 = pneg %p192
    $region22: #{tpu_custom_call.1} parent=5 // pred_check_branch
      %195 = sbr.rel (%p193) target = $region24
    $region23: #{tpu_custom_call.1} parent=5 // pred_region
      // Predicated region
      $region25: #{tpu_custom_call.1} parent=23 // pred_check
        %p196 = pneg %p43
      $region26: #{tpu_custom_call.1} parent=23 // pred_check_branch
        %198 = sbr.rel (%p196) target = $region28
      $region27: #{tpu_custom_call.1} parent=23 // pred_region
        %p199 = scmp.lt.s32.totalorder %s18, 1
        %s200 = scalar_select %p199, %s18, 1
        %s201 = smul.addr %s200, 8
        %s202 = scalar_lea.vmem %s0, %s201
      $region28: #{tpu_custom_call.1} parent=23 // pred_fallthru
        _
      // Predicated region
      $region29: #{tpu_custom_call.1} parent=23 // pred_check
        %p203 = pneg %p111
      $region30: #{tpu_custom_call.1} parent=23 // pred_check_branch
        %205 = sbr.rel (%p203) target = $region32
      $region31: #{tpu_custom_call.1} parent=23 // pred_region
        %p206 = scmp.lt.s32.totalorder %s19, 11
        %s207 = scalar_select %p206, %s19, 11
        %s208 = smul.addr %s207, 4
        %s209 = smul.addr %s208, 4
        %s210 = scalar_lea.vmem %s3, %s209
      $region32: #{tpu_custom_call.1} parent=23 // pred_fallthru
        _
      // Predicated region
      $region33: #{tpu_custom_call.1} parent=23 // pred_check
        %p211 = pneg %p137
      $region34: #{tpu_custom_call.1} parent=23 // pred_check_branch
        %213 = sbr.rel (%p211) target = $region36
      $region35: #{tpu_custom_call.1} parent=23 // pred_region
        %p214 = scmp.lt.s32.totalorder %s19, 11
        %s215 = scalar_select %p214, %s19, 11
        %s216 = scalar_lea.vmem %s4, %s215
      $region36: #{tpu_custom_call.1} parent=23 // pred_fallthru
        _
    $region24: #{tpu_custom_call.1} parent=5 // pred_fallthru
      _
    %p217 = scmp.le.s32.totalorder 1, %s11
    %p218 = scmp.lt.s32.totalorder %s11, 25
    %p219 = pnand %p217, %p218
    %p220 = pneg %p219
    // Predicated region
    $region37: #{tpu_custom_call.1} parent=5 // pred_check
      _
    $region38: #{tpu_custom_call.1} parent=5 // pred_check_branch
      %222 = sbr.rel (%p219) target = $region40
    $region39: #{tpu_custom_call.1} parent=5 // pred_region
      %s223 = ssub.s32 %s11, 1
      %p224 = scmp.lt.s32.totalorder %s20, 1
      %s225 = scalar_select %p224, %s20, 1
      %s226 = smul.addr %s225, 8
      %s227 = scalar_lea.vmem %s0, %s226
      %p228 = pneg %p49
      %p229 = pneg %p46
      %p230 = pneg %p70
      %p231 = pneg %p67
      %p232 = pneg %p91
      %p233 = pneg %p88
      %p234 = scmp.lt.s32.totalorder %s21, 11
      %s235 = scalar_select %p234, %s21, 11
      %s236 = smul.addr %s235, 4
      %s237 = smul.addr %s236, 4
      %s238 = scalar_lea.vmem %s3, %s237
      %p239 = pneg %p117
      %p240 = pneg %p114
      %p241 = scmp.lt.s32.totalorder %s21, 11
      %s242 = scalar_select %p241, %s21, 11
      %s243 = scalar_lea.vmem %s4, %s242
      %p244 = pneg %p143
      %p245 = pneg %p140
      %p246 = pneg %p171
      %p247 = pneg %p168
      %p248 = scmp.lt.s32.totalorder %s21, 11
      %s249 = scalar_select %p248, %s21, 11
      %p250 = scmp.lt.s32.totalorder %s20, 1
      %s251 = scalar_select %p250, %s20, 1
      %s252 = smul.addr %s249, 2
      %s253 = sadd.s32 %s251, %s252
      %s254 = smul.addr %s253, 4
      %s255 = scalar_lea.vmem %s5, %s254
      %p256 = scmp.lt.s32.totalorder %s20, 1
      %s257 = scalar_select %p256, %s20, 1
      %s258 = smul.addr %s257, 8
      %s259 = scalar_lea.vmem %s0, %s258
      %p260 = scmp.lt.s32.totalorder %s21, 11
      %s261 = scalar_select %p260, %s21, 11
      %s262 = smul.addr %s261, 4
      %s263 = smul.addr %s262, 4
      %s264 = scalar_lea.vmem %s3, %s263
      %p265 = scmp.lt.s32.totalorder %s21, 11
      %s266 = scalar_select %p265, %s21, 11
      %s267 = scalar_lea.vmem %s4, %s266
      %p268 = scmp.lt.s32.totalorder %s21, 11
      %s269 = scalar_select %p268, %s21, 11
      %p270 = scmp.lt.s32.totalorder %s20, 1
      %s271 = scalar_select %p270, %s20, 1
      %s272 = smul.addr %s269, 2
      %s273 = sadd.s32 %s271, %s272
      %s274 = smul.addr %s273, 4
      %s275 = scalar_lea.vmem %s5, %s274
      %p277 = scmp.eq.s32.totalorder %s21, 0
      // Predicated region
      $region41: #{tpu_custom_call.1} parent=39 // pred_check
        %p278 = pneg %p277
      $region42: #{tpu_custom_call.1} parent=39 // pred_check_branch
        %280 = sbr.rel (%p278) target = $region44
      $region43: #{tpu_custom_call.1} parent=39 // pred_region
        %v281 = vld [vmem:[%s259] sm:$0xff]
        %vm282 = vcmask 261120
        %v283 = vsel %vm282, %v281, 0.0
        %284 = vadd.xlane.f32.xlu0 %v283
        %v285 = vpop.xlane.xlu0 %284
        %v286 = vrcp.pop 32.0
        %v287 = vmul.f32 %v285, %v286
        %v288 = vsub.f32 %v281, %v287
        %v289 = vmul.f32 %v288, %v288
        %v290 = vsel %vm282, %v289, 0.0
        %291 = vadd.xlane.f32.xlu0 %v290
        %v292 = vpop.xlane.xlu0 %291
        %v293 = vmul.f32 %v292, %v286
        %v294 = vadd.f32 %v293, 1e-06
        %v295 = vrsqrt.pop %v294
        %v296 = vmul.f32 %v288, %v295
        %v297 = vld [vmem:[%s1] sm:$0x1]
        %v299 = vlaneseq
        %v300 = vshrl.u32 %v299, 7
        %v301 = vsub.s32 0, %v300
        %v302 = vrot.slane %v297, %v301
        %v304 = vmul.f32 %v296, %v302
        %v305 = vld [vmem:[%s2] sm:$0x1]
        %v307 = vlaneseq
        %v308 = vshrl.u32 %v307, 7
        %v309 = vsub.s32 0, %v308
        %v310 = vrot.slane %v305, %v309
        %v312 = vadd.f32 %v304, %v310
        %v313 = vpack.c.bf16 %v312, %v312
        %vm314 = vcmask 257024
        %315 = vst.msk [vmem:[#allocation2] sm:$0xf] %vm314, %v313
      $region44: #{tpu_custom_call.1} parent=39 // pred_fallthru
        _
      %v316 = vld [vmem:[#allocation2] sm:$0xf]
      %v317 = vld [vmem:[%s264] sm:$0xf]
      %v318 = vld [vmem:[%s264 + $0x4] sm:$0xf]
      %v319 = vld [vmem:[%s264 + $0x8] sm:$0xf]
      %v320 = vld [vmem:[%s264 + $0xc] sm:$0xf]
      %v321 = vld [vmem:[%s267] sm:$0x1]
      %v323 = vlaneseq
      %v324 = vshrl.u32 %v323, 7
      %v325 = vsub.s32 0, %v324
      %v326 = vrot.slane %v321, %v325
      %v332 = vunpack.c.l.b16 %v317
      %v333 = vunpack.c.l.b16 %v318
      %v334 = vunpack.c.l.b16 %v319
      %v335 = vunpack.c.l.b16 %v320
      %v336 = vpack.c.b16 %v333, %v332
      %v337 = vpack.c.b16 %v335, %v334
      %vm340 = vcmask 261120
      %v342 = vsel %vm340, %v316, 0
      %344 = vmatprep.subr.bf16.mxu0 0
      %345 = vmatpush1.bf16.msra.mxu0 %v336
      %346 = vmatprep.subr.bf16.mxu0 0
      %347 = vmatpush1.bf16.msra.mxu0 %v337
      %348 = vmatprep.subr.bf16.mxu0 0
      %349 = vmatpush1.bf16.msra.mxu0 0
      %350 = vmatprep.subr.bf16.mxu0 0
      %351 = vmatpush1.bf16.msra.mxu0 0
      %352 = vmatprep.subr.bf16.mxu0 0
      %353 = vmatpush1.bf16.msra.mxu0 0
      %354 = vmatprep.subr.bf16.mxu0 0
      %355 = vmatpush1.bf16.msra.mxu0 0
      %356 = vmatprep.subr.bf16.mxu0 0
      %357 = vmatpush1.bf16.msra.mxu0 0
      %358 = vmatprep.subr.bf16.mxu0 0
      %359 = vmatpush1.bf16.msra.mxu0 0
      %360 = vmatprep.subr.bf16.mxu0 0
      %361 = vmatpush1.bf16.msra.mxu0 0
      %362 = vmatprep.subr.bf16.mxu0 0
      %363 = vmatpush1.bf16.msra.mxu0 0
      %364 = vmatprep.subr.bf16.mxu0 0
      %365 = vmatpush1.bf16.msra.mxu0 0
      %366 = vmatprep.subr.bf16.mxu0 0
      %367 = vmatpush1.bf16.msra.mxu0 0
      %368 = vmatprep.subr.bf16.mxu0 0
      %369 = vmatpush1.bf16.msra.mxu0 0
      %370 = vmatprep.subr.bf16.mxu0 0
      %371 = vmatpush1.bf16.msra.mxu0 0
      %372 = vmatprep.subr.bf16.mxu0 0
      %373 = vmatpush1.bf16.msra.mxu0 0
      %374 = vmatprep.subr.bf16.mxu0 0
      %375 = vmatpush1.bf16.msra.mxu0 0
      %376 = vmatprep.mubr.bf16.mxu0 0
      %377 = vmatmul.mubr.bf16.gmra.mrb[0].mxu0 %v342
      %v378 = vpop.f32.mrb[0].mxu0
      %v379 = vadd.f32 %v326, %v378
      %v380 = vpop.f32.mrb[0].mxu0
      %v381 = vpop.f32.mrb[0].mxu0
      %v382 = vpop.f32.mrb[0].mxu0
      %383 = vdwg.mxu0
      %v384 = vpack.c.bf16 %v379, %v379
      %vm385 = vcmask 60416
      %386 = vst.msk [vmem:[%s275] sm:$0xf] %vm385, %v384
      %p387 = scmp.lt.s32.totalorder %s21, 11
      %s388 = scalar_select %p387, %s21, 11
      %p389 = scmp.lt.s32.totalorder %s20, 1
      %s390 = scalar_select %p389, %s20, 1
      %s391 = smul.addr %s388, 2
      %s392 = sadd.s32 %s390, %s391
      %s393 = smul.addr %s392, 4
      %s394 = scalar_lea.vmem %s5, %s393
      // Predicated region
      $region45: #{tpu_custom_call.1} parent=39 // pred_check
        %p395 = pneg %p168
      $region46: #{tpu_custom_call.1} parent=39 // pred_check_branch
        %397 = sbr.rel (%p395) target = $region48
      $region47: #{tpu_custom_call.1} parent=39 // pred_region
        _
      $region48: #{tpu_custom_call.1} parent=39 // pred_fallthru
        _
    $region40: #{tpu_custom_call.1} parent=5 // pred_fallthru
      _
    %p398 = scmp.le.s32.totalorder 2, %s11
    // Predicated region
    $region49: #{tpu_custom_call.1} parent=5 // pred_check
      %p399 = pneg %p398
    $region50: #{tpu_custom_call.1} parent=5 // pred_check_branch
      %401 = sbr.rel (%p399) target = $region52
    $region51: #{tpu_custom_call.1} parent=5 // pred_region
      %s402 = ssub.s32 %s11, 2
      // Predicated region
      $region53: #{tpu_custom_call.1} parent=51 // pred_check
        %p403 = pneg %p174
      $region54: #{tpu_custom_call.1} parent=51 // pred_check_branch
        %405 = sbr.rel (%p403) target = $region56
      $region55: #{tpu_custom_call.1} parent=51 // pred_region
        %p406 = scmp.lt.s32.totalorder %s23, 11
        %s407 = scalar_select %p406, %s23, 11
        %p408 = scmp.lt.s32.totalorder %s22, 1
        %s409 = scalar_select %p408, %s22, 1
        %s410 = smul.addr %s407, 2
        %s411 = sadd.s32 %s409, %s410
        %s412 = smul.addr %s411, 4
        %s413 = scalar_lea.vmem %s5, %s412
      $region56: #{tpu_custom_call.1} parent=51 // pred_fallthru
        _
    $region52: #{tpu_custom_call.1} parent=5 // pred_fallthru
      _
  $region6: #{tpu_custom_call.1} parent=0 // loop_footer
    %s15 = sadd.s32 1, %s11
  $region7: #{tpu_custom_call.1} parent=0 // loop_footer_branch
    %10 = sbr.rel target = $region3
  $region8: #{tpu_custom_call.1} parent=0 // loop_exit
    _

</llo_original>
